<compile_context>
chip_gen: v7x
topology: tpu7x:2x2x1
jax: 0.10.0
libtpu: 0.0.40
codegen_flags: <defaults>
</compile_context>

<pallas_src>
import jax
import jax.numpy as jnp
from jax.experimental import pallas as pl
from jax.experimental.pallas import tpu as pltpu


def mlp_kernel(xt_ref, p_ref, b2_ref, o_ref):
    """xt_ref: (D_in, TB)  p_ref: (H, D_in+2)  b2_ref: (1,1) SMEM  o_ref: (1, TB)."""
    d_in = xt_ref.shape[0]
    p = p_ref[...]                       # one resident parameter slab
    w1 = p[:, :d_in]                     # (H, D_in)  -- PyTorch fc1.weight layout
    b1 = p[:, d_in:d_in + 1]             # (H, 1)
    w2 = p[:, d_in + 1:d_in + 2]         # (H, 1)     -- fc2.weight as a column

    # fc1 on the MXU, batch on lanes: (H, D_in) @ (D_in, TB) -> (H, TB)
    h = jnp.dot(w1, xt_ref[...], preferred_element_type=jnp.float32) + b1
    h = jnp.maximum(h, 0.0)              # ReLU on the VPU

    # fc2 (D_out == 1): VPU multiply + sublane reduction instead of a 1-lane matmul.
    out = jnp.sum(h * w2, axis=0, keepdims=True) + b2_ref[0, 0]   # (1, TB)
    o_ref[...] = out.astype(o_ref.dtype)


def mlp_forward(x, w1, b1, w2, b2, *, tb_max=256):
    """Fused MLP forward.

    x:  (B, D_in)          w1: (H, D_in)   b1: (H,)     (PyTorch nn.Linear layout)
    w2: (1, H)             b2: (1,)
    Returns the PyTorch-equivalent of fc2(relu(fc1(x))).squeeze().
    """
    B, d_in = x.shape
    H = w1.shape[0]
    d_out = w2.shape[0]
    assert d_out == 1, "optimized path assumes output_size == 1 (scalar head)"

    # Layout plumbing in the wrapper (tiny XLA ops): batch -> lane axis,
    # parameters -> one slab, b2 -> SMEM scalar.
    x_t = x.T                                                    # (D_in, B)
    slab = jnp.concatenate(
        [w1, b1.reshape(H, 1), w2.reshape(H, 1)], axis=1)        # (H, D_in + 2)
    b2_2d = b2.reshape(1, 1)

    if B <= tb_max:
        tb, grid_b, Bp = B, 1, B                                 # single full block
    else:
        tb = tb_max                                              # lane tiles (mult. of 128)
        Bp = ((B + tb - 1) // tb) * tb
        x_t = jnp.pad(x_t, ((0, 0), (0, Bp - B)))
        grid_b = Bp // tb

    out = pl.pallas_call(
        mlp_kernel,
        out_shape=jax.ShapeDtypeStruct((1, Bp), x.dtype),
        grid=(grid_b,),
        in_specs=[
            pl.BlockSpec((d_in, tb), lambda i: (0, i)),          # x^T, tiled over batch
            pl.BlockSpec((H, d_in + 2), lambda i: (0, 0)),       # param slab, resident
            pl.BlockSpec(memory_space=pltpu.MemorySpace.SMEM),   # b2 scalar
        ],
        out_specs=pl.BlockSpec((1, tb), lambda i: (0, i)),       # lane-dense output row
        compiler_params=pltpu.CompilerParams(
            dimension_semantics=("parallel",)),                  # shard batch over TCs (v7x)
    )(x_t, slab, b2_2d)

    # PyTorch .squeeze(): drop all size-1 dims (also drops batch if B == 1).
    return jnp.squeeze(out[:, :B])


def init_params(key, d_in, hidden, d_out, dtype=jnp.float32):
    """Deterministic PyTorch-nn.Linear-style init (uniform +-1/sqrt(fan_in))."""
    k1, k2, k3, k4 = jax.random.split(key, 4)
    lim1 = 1.0 / jnp.sqrt(d_in)
    lim2 = 1.0 / jnp.sqrt(hidden)
    w1 = jax.random.uniform(k1, (hidden, d_in), dtype, -lim1, lim1)   # fc1.weight
    b1 = jax.random.uniform(k2, (hidden,), dtype, -lim1, lim1)        # fc1.bias
    w2 = jax.random.uniform(k3, (d_out, hidden), dtype, -lim2, lim2)  # fc2.weight
    b2 = jax.random.uniform(k4, (d_out,), dtype, -lim2, lim2)         # fc2.bias
    return w1, b1, w2, b2


if __name__ == "__main__":
    # Small shapes implied by the module: input_shape=(32,), hidden=64, output=1.
    B, D_IN, HIDDEN, D_OUT = 8, 32, 64, 1

    key = jax.random.PRNGKey(0)
    kx, kp = jax.random.split(key)
    x = jax.random.normal(kx, (B, D_IN), jnp.float32)
    w1, b1, w2, b2 = init_params(kp, D_IN, HIDDEN, D_OUT)

    out = jax.block_until_ready(mlp_forward(x, w1, b1, w2, b2))

    # Pure-JAX reference of the same PyTorch math.
    ref = jnp.squeeze(jnp.maximum(x @ w1.T + b1, 0.0) @ w2.T + b2)
    assert out.shape == ref.shape == (B,), (out.shape, ref.shape)
    assert jnp.allclose(out, ref, atol=1e-5, rtol=1e-5)

    print("KERNEL_OK")
</pallas_src>

<mosaic_0001>
module attributes {stable_mosaic.version = 11 : i64} {
  func.func @mlp_kernel(%arg0: i32, %arg1: memref<32x8xf32, #tpu.memory_space<vmem>>, %arg2: memref<64x34xf32, #tpu.memory_space<vmem>>, %arg3: memref<1x1xf32, #tpu.memory_space<smem>>, %arg4: memref<1x8xf32, #tpu.memory_space<vmem>>) attributes {dimension_semantics = [#tpu.dimension_semantics<parallel>], iteration_bounds = array<i64: 1>, scalar_prefetch = 0 : i64, scratch_operands = 0 : i64, tpu.core_type = #tpu.core_type<tc>, window_params = [{transform_indices = @transform_0, window_bounds = array<i64: 32, 8>}, {pipeline_mode = #tpu.pipeline_mode<synchronous>, transform_indices = @transform_1, window_bounds = array<i64: 64, 34>}, {transform_indices = @transform_2, window_bounds = array<i64: 1, 1>}, {transform_indices = @transform_3, window_bounds = array<i64: 1, 8>}]} {
    %c0 = arith.constant 0 : index
    %c0_0 = arith.constant 0 : index
    %0 = vector.load %arg2[%c0, %c0_0] : memref<64x34xf32, #tpu.memory_space<vmem>>, vector<64x34xf32>
    %1 = vector.extract_strided_slice %0 {offsets = [0, 0], sizes = [64, 32], strides = [1, 1]} : vector<64x34xf32> to vector<64x32xf32>
    %2 = vector.extract_strided_slice %0 {offsets = [0, 32], sizes = [64, 1], strides = [1, 1]} : vector<64x34xf32> to vector<64x1xf32>
    %3 = vector.extract_strided_slice %0 {offsets = [0, 33], sizes = [64, 1], strides = [1, 1]} : vector<64x34xf32> to vector<64x1xf32>
    %c0_1 = arith.constant 0 : index
    %c0_2 = arith.constant 0 : index
    %4 = vector.load %arg1[%c0_1, %c0_2] : memref<32x8xf32, #tpu.memory_space<vmem>>, vector<32x8xf32>
    %cst = arith.constant dense<0.000000e+00> : vector<64x8xf32>
    %5 = tpu.matmul %1, %4, %cst {dimension_numbers = #tpu.dot_dimension_numbers<[1], [0], [0], [1], [0, 0, 1, 1], [], []>} : vector<64x32xf32>, vector<32x8xf32>, vector<64x8xf32> -> vector<64x8xf32>
    %6 = vector.broadcast %2 : vector<64x1xf32> to vector<64x8xf32>
    %7 = arith.addf %5, %6 : vector<64x8xf32>
    %cst_3 = arith.constant 0.000000e+00 : f32
    %8 = vector.broadcast %cst_3 : f32 to vector<64x8xf32>
    %9 = arith.maximumf %7, %8 : vector<64x8xf32>
    %10 = vector.broadcast %3 : vector<64x1xf32> to vector<64x8xf32>
    %11 = arith.mulf %9, %10 : vector<64x8xf32>
    %cst_4 = arith.constant dense<0.000000e+00> : vector<8xf32>
    %12 = vector.multi_reduction <add>, %11, %cst_4 [0] : vector<64x8xf32> to vector<8xf32>
    %13 = vector.shape_cast %12 : vector<8xf32> to vector<1x8xf32>
    %c0_5 = arith.constant 0 : index
    %c0_6 = arith.constant 0 : index
    %14 = memref.load %arg3[%c0_5, %c0_6] : memref<1x1xf32, #tpu.memory_space<smem>>
    %15 = vector.broadcast %14 : f32 to vector<1x8xf32>
    %16 = arith.addf %13, %15 : vector<1x8xf32>
    %c0_7 = arith.constant 0 : index
    %c0_8 = arith.constant 0 : index
    %17 = vector.load %arg4[%c0_7, %c0_8] : memref<1x8xf32, #tpu.memory_space<vmem>>, vector<1x8xf32>
    tpu.vector_store %arg4[%c0_7, %c0_8], %16 {strides = array<i32>} : memref<1x8xf32, #tpu.memory_space<vmem>>, vector<1x8xf32>,
    return
  }
  func.func @transform_0(%arg0: i32) -> (i32, i32) {
    %c0_i32 = arith.constant 0 : i32
    %c0_i32_0 = arith.constant 0 : i32
    return %c0_i32, %arg0 : i32, i32
  }
  func.func @transform_1(%arg0: i32) -> (i32, i32) {
    %c0_i32 = arith.constant 0 : i32
    %c0_i32_0 = arith.constant 0 : i32
    %c0_i32_1 = arith.constant 0 : i32
    return %c0_i32, %c0_i32_0 : i32, i32
  }
  func.func @transform_2(%arg0: i32) -> (i32, i32) {
    %c0_i32 = arith.constant 0 : i32
    %c0_i32_0 = arith.constant 0 : i32
    %c0_i32_1 = arith.constant 0 : i32
    return %c0_i32, %c0_i32_0 : i32, i32
  }
  func.func @transform_3(%arg0: i32) -> (i32, i32) {
    %c0_i32 = arith.constant 0 : i32
    %c0_i32_0 = arith.constant 0 : i32
    return %c0_i32, %arg0 : i32, i32
  }
}

</mosaic_0001>

<llo_original>
// kernel: tpu_custom_call.1
$region0: #{tpu_custom_call.1}
  #allocation0 [shape = 'u32[]', space=smem, size = 0x4, offset = 0x4, fixed_abs, tag = 'smem constant byte address 0x4 - core index']
  #allocation1 [shape = 'u32[144,128]{1,0:T(1,128)}', space=vmem, size = 0x12000, scoped, tag = 'internal scratch']
  #allocation2 [shape = 'f32[1,1]{1,0:T(1,128)S(6)}', space=smem, size = 0x200, scoped, tag = 'scoped memory for tpu_custom_call.1']
  %s0 = inlined_call_operand.vmem [shape: f32[32,8], index: 0, kind: input, shape index: {}]
  %s1 = inlined_call_operand.vmem [shape: f32[64,34], index: 1, kind: input, shape index: {}]
  %s2 = inlined_call_operand.<no memory space> [shape: f32[1,1], index: 2, kind: input, shape index: {}]
  %s3 = inlined_call_operand.hbm [shape: f32[1,8], index: 3, kind: output, shape index: {}]
  %s4 = sld [smem:[#allocation0]]
  $region22: #{tpu_custom_call.1} parent=0
    _
  %s6 = ssub.s32 1, %s4
  %s7 = scalar_select 0, %s6, %s4
  %8 = sst [smem:[#allocation2]] %s2
  $region1: #{tpu_custom_call.1} parent=0
    #allocation3 [shape = 'u8[512]{0}', space=vmem, size = 0x400, scoped, tag = 'output window, operand 0, single buffered']
    #allocation4 [shape = 's32[1]{0}', space=sflag, size = 0x4, scoped, tag = 'scoped memory for tpu_custom_call.1']
    %9 = vsyncpa [#allocation4], 0
    // Predicated region
    $region2: #{tpu_custom_call.1} parent=1 // pred_check
      _
    $region3: #{tpu_custom_call.1} parent=1 // pred_check_branch
      %11 = sbr.rel (0) target = $region5
    $region4: #{tpu_custom_call.1} parent=1 // pred_region
      _
    $region5: #{tpu_custom_call.1} parent=1 // pred_fallthru
      _
    // Predicated region
    $region6: #{tpu_custom_call.1} parent=1 // pred_check
      _
    $region7: #{tpu_custom_call.1} parent=1 // pred_check_branch
      %13 = sbr.rel (0) target = $region9
    $region8: #{tpu_custom_call.1} parent=1 // pred_region
      _
    $region9: #{tpu_custom_call.1} parent=1 // pred_fallthru
      _
    // Predicated region
    $region10: #{tpu_custom_call.1} parent=1 // pred_check
      _
    $region11: #{tpu_custom_call.1} parent=1 // pred_check_branch
      %15 = sbr.rel (0) target = $region13
    $region12: #{tpu_custom_call.1} parent=1 // pred_region
      _
    $region13: #{tpu_custom_call.1} parent=1 // pred_fallthru
      _
    %v16 = vld [vmem:[%s1] sm:$0xff]
    %v17 = vld [vmem:[%s1 + $0x8] sm:$0xff]
    %v18 = vld [vmem:[%s1 + $0x10] sm:$0xff]
    %v19 = vld [vmem:[%s1 + $0x18] sm:$0xff]
    %v20 = vld [vmem:[%s1 + $0x20] sm:$0xff]
    %v21 = vld [vmem:[%s1 + $0x28] sm:$0xff]
    %v22 = vld [vmem:[%s1 + $0x30] sm:$0xff]
    %v23 = vld [vmem:[%s1 + $0x38] sm:$0xff]
    %v24 = vld [vmem:[%s0] sm:$0xff]
    %v25 = vld [vmem:[%s0 + $0x8] sm:$0xff]
    %v26 = vld [vmem:[%s0 + $0x10] sm:$0xff]
    %v27 = vld [vmem:[%s0 + $0x18] sm:$0xff]
    %29 = vset.pattern.permute.xlu0 32
    %30 = vperm.xlu0 %29, %v16
    %v31 = vpop.permute.xlu0 %30
    %34 = vset.pattern.permute.xlu0 32
    %35 = vperm.xlu0 %34, %v17
    %v36 = vpop.permute.xlu0 %35
    %39 = vset.pattern.permute.xlu0 32
    %40 = vperm.xlu0 %39, %v18
    %v41 = vpop.permute.xlu0 %40
    %44 = vset.pattern.permute.xlu0 32
    %45 = vperm.xlu0 %44, %v19
    %v46 = vpop.permute.xlu0 %45
    %49 = vset.pattern.permute.xlu0 32
    %50 = vperm.xlu0 %49, %v20
    %v51 = vpop.permute.xlu0 %50
    %54 = vset.pattern.permute.xlu0 32
    %55 = vperm.xlu0 %54, %v21
    %v56 = vpop.permute.xlu0 %55
    %59 = vset.pattern.permute.xlu0 32
    %60 = vperm.xlu0 %59, %v22
    %v61 = vpop.permute.xlu0 %60
    %64 = vset.pattern.permute.xlu0 32
    %65 = vperm.xlu0 %64, %v23
    %v66 = vpop.permute.xlu0 %65
    %vm68 = vcmask 261120
    %v69 = vsel %vm68, %v16, 0
    %v71 = vsel %vm68, %v17, 0
    %v73 = vsel %vm68, %v18, 0
    %v75 = vsel %vm68, %v19, 0
    %v77 = vsel %vm68, %v20, 0
    %v79 = vsel %vm68, %v21, 0
    %v81 = vsel %vm68, %v22, 0
    %v83 = vsel %vm68, %v23, 0
    %85 = vmatprep.subr.mxu0 0.0
    %86 = vmatpush1.msra.mxu0 %v24
    %87 = vmatprep.subr.mxu0 0.0
    %88 = vmatpush1.msra.mxu0 %v25
    %89 = vmatprep.subr.mxu0 0.0
    %90 = vmatpush1.msra.mxu0 %v26
    %91 = vmatprep.subr.mxu0 0.0
    %92 = vmatpush1.msra.mxu0 %v27
    %93 = vmatprep.subr.mxu0 0.0
    %94 = vmatpush1.msra.mxu0 0.0
    %95 = vmatprep.subr.mxu0 0.0
    %96 = vmatpush1.msra.mxu0 0.0
    %97 = vmatprep.subr.mxu0 0.0
    %98 = vmatpush1.msra.mxu0 0.0
    %99 = vmatprep.subr.mxu0 0.0
    %100 = vmatpush1.msra.mxu0 0.0
    %101 = vmatprep.subr.mxu0 0.0
    %102 = vmatpush1.msra.mxu0 0.0
    %103 = vmatprep.subr.mxu0 0.0
    %104 = vmatpush1.msra.mxu0 0.0
    %105 = vmatprep.subr.mxu0 0.0
    %106 = vmatpush1.msra.mxu0 0.0
    %107 = vmatprep.subr.mxu0 0.0
    %108 = vmatpush1.msra.mxu0 0.0
    %109 = vmatprep.subr.mxu0 0.0
    %110 = vmatpush1.msra.mxu0 0.0
    %111 = vmatprep.subr.mxu0 0.0
    %112 = vmatpush1.msra.mxu0 0.0
    %113 = vmatprep.subr.mxu0 0.0
    %114 = vmatpush1.msra.mxu0 0.0
    %115 = vmatprep.subr.mxu0 0.0
    %116 = vmatpush1.msra.mxu0 0.0
    %117 = vmatprep.subr.mxu0 0.0
    %118 = vmatpush1.msra.mxu0 0.0
    %119 = vmatprep.subr.mxu0 0.0
    %120 = vmatpush1.msra.mxu0 0.0
    %121 = vmatprep.subr.mxu0 0.0
    %122 = vmatpush1.msra.mxu0 0.0
    %123 = vmatprep.subr.mxu0 0.0
    %124 = vmatpush1.msra.mxu0 0.0
    %125 = vmatprep.subr.mxu0 0.0
    %126 = vmatpush1.msra.mxu0 0.0
    %127 = vmatprep.subr.mxu0 0.0
    %128 = vmatpush1.msra.mxu0 0.0
    %129 = vmatprep.subr.mxu0 0.0
    %130 = vmatpush1.msra.mxu0 0.0
    %131 = vmatprep.subr.mxu0 0.0
    %132 = vmatpush1.msra.mxu0 0.0
    %133 = vmatprep.subr.mxu0 0.0
    %134 = vmatpush1.msra.mxu0 0.0
    %135 = vmatprep.subr.mxu0 0.0
    %136 = vmatpush1.msra.mxu0 0.0
    %137 = vmatprep.subr.mxu0 0.0
    %138 = vmatpush1.msra.mxu0 0.0
    %139 = vmatprep.subr.mxu0 0.0
    %140 = vmatpush1.msra.mxu0 0.0
    %141 = vmatprep.subr.mxu0 0.0
    %142 = vmatpush1.msra.mxu0 0.0
    %143 = vmatprep.subr.mxu0 0.0
    %144 = vmatpush1.msra.mxu0 0.0
    %145 = vmatprep.subr.mxu0 0.0
    %146 = vmatpush1.msra.mxu0 0.0
    %147 = vmatprep.subr.mxu0 0.0
    %148 = vmatpush1.msra.mxu0 0.0
    %149 = vmatprep.mubr.f32.mxu0 0.0
    %150 = vmatmul.mubr.f32.gmra.mrb[0].mxu0 %v69
    %v151 = vpop.f32.mrb[0].mxu0
    %v152 = vadd.f32 %v31, %v151
    %v153 = vpop.f32.mrb[0].mxu0
    %154 = vmatprep.mubr.f32.mxu0 0.0
    %155 = vmatmul.mubr.f32.gmra.mrb[0].mxu0 %v71
    %v156 = vpop.f32.mrb[0].mxu0
    %v157 = vadd.f32 %v36, %v156
    %v158 = vpop.f32.mrb[0].mxu0
    %159 = vmatprep.mubr.f32.mxu0 0.0
    %160 = vmatmul.mubr.f32.gmra.mrb[0].mxu0 %v73
    %v161 = vpop.f32.mrb[0].mxu0
    %v162 = vadd.f32 %v41, %v161
    %v163 = vpop.f32.mrb[0].mxu0
    %164 = vmatprep.mubr.f32.mxu0 0.0
    %165 = vmatmul.mubr.f32.gmra.mrb[0].mxu0 %v75
    %v166 = vpop.f32.mrb[0].mxu0
    %v167 = vadd.f32 %v46, %v166
    %v168 = vpop.f32.mrb[0].mxu0
    %169 = vmatprep.mubr.f32.mxu0 0.0
    %170 = vmatmul.mubr.f32.gmra.mrb[0].mxu0 %v77
    %v171 = vpop.f32.mrb[0].mxu0
    %v172 = vadd.f32 %v51, %v171
    %v173 = vpop.f32.mrb[0].mxu0
    %174 = vmatprep.mubr.f32.mxu0 0.0
    %175 = vmatmul.mubr.f32.gmra.mrb[0].mxu0 %v79
    %v176 = vpop.f32.mrb[0].mxu0
    %v177 = vadd.f32 %v56, %v176
    %v178 = vpop.f32.mrb[0].mxu0
    %179 = vmatprep.mubr.f32.mxu0 0.0
    %180 = vmatmul.mubr.f32.gmra.mrb[0].mxu0 %v81
    %v181 = vpop.f32.mrb[0].mxu0
    %v182 = vadd.f32 %v61, %v181
    %v183 = vpop.f32.mrb[0].mxu0
    %184 = vmatprep.mubr.f32.mxu0 0.0
    %185 = vmatmul.mubr.f32.gmra.mrb[0].mxu0 %v83
    %v186 = vpop.f32.mrb[0].mxu0
    %v187 = vadd.f32 %v66, %v186
    %v188 = vpop.f32.mrb[0].mxu0
    %189 = vdwg.mxu0
    %v190 = vmax.f32 %v152, 0.0
    %v191 = vmax.f32 %v157, 0.0
    %v192 = vmax.f32 %v162, 0.0
    %v193 = vmax.f32 %v167, 0.0
    %v194 = vmax.f32 %v172, 0.0
    %v195 = vmax.f32 %v177, 0.0
    %v196 = vmax.f32 %v182, 0.0
    %v197 = vmax.f32 %v187, 0.0
    %198 = vset.pattern.permute.xlu0 33
    %199 = vperm.xlu0 %198, %v16
    %v200 = vpop.permute.xlu0 %199
    %202 = vset.pattern.permute.xlu0 33
    %203 = vperm.xlu0 %202, %v17
    %v204 = vpop.permute.xlu0 %203
    %206 = vset.pattern.permute.xlu0 33
    %207 = vperm.xlu0 %206, %v18
    %v208 = vpop.permute.xlu0 %207
    %210 = vset.pattern.permute.xlu0 33
    %211 = vperm.xlu0 %210, %v19
    %v212 = vpop.permute.xlu0 %211
    %214 = vset.pattern.permute.xlu0 33
    %215 = vperm.xlu0 %214, %v20
    %v216 = vpop.permute.xlu0 %215
    %218 = vset.pattern.permute.xlu0 33
    %219 = vperm.xlu0 %218, %v21
    %v220 = vpop.permute.xlu0 %219
    %222 = vset.pattern.permute.xlu0 33
    %223 = vperm.xlu0 %222, %v22
    %v224 = vpop.permute.xlu0 %223
    %226 = vset.pattern.permute.xlu0 33
    %227 = vperm.xlu0 %226, %v23
    %v228 = vpop.permute.xlu0 %227
    %v230 = vmul.f32 %v190, %v200
    %v231 = vmul.f32 %v191, %v204
    %v232 = vmul.f32 %v192, %v208
    %v233 = vmul.f32 %v193, %v212
    %v234 = vmul.f32 %v194, %v216
    %v235 = vmul.f32 %v195, %v220
    %v236 = vmul.f32 %v196, %v224
    %v237 = vmul.f32 %v197, %v228
    %vm238 = vcmask 64512
    %v239 = vsel %vm238, %v230, 0.0
    %v240 = vsel %vm238, %v231, 0.0
    %v241 = vadd.f32 %v239, %v240
    %v242 = vsel %vm238, %v232, 0.0
    %v243 = vadd.f32 %v241, %v242
    %v244 = vsel %vm238, %v233, 0.0
    %v245 = vadd.f32 %v243, %v244
    %v246 = vsel %vm238, %v234, 0.0
    %v247 = vadd.f32 %v245, %v246
    %v248 = vsel %vm238, %v235, 0.0
    %v249 = vadd.f32 %v247, %v248
    %v250 = vsel %vm238, %v236, 0.0
    %v251 = vadd.f32 %v249, %v250
    %v252 = vsel %vm238, %v237, 0.0
    %v253 = vadd.f32 %v251, %v252
    %v254 = vrot.slane %v253, 4
    %v255 = vadd.f32 %v253, %v254
    %v256 = vrot.slane %v255, 2
    %v257 = vadd.f32 %v255, %v256
    %v258 = vrot.slane %v257, 1
    %v259 = vadd.f32 %v257, %v258
    %s260 = sld [smem:[#allocation2]]
    %v261 = vstv %s260
    %v262 = vadd.f32 %v259, %v261
    %vm263 = vcmask 57344
    %264 = vst.msk [vmem:[#allocation3] sm:$0x1] %vm263, %v262
    // Predicated region
    $region14: #{tpu_custom_call.1} parent=1 // pred_check
      _
    $region15: #{tpu_custom_call.1} parent=1 // pred_check_branch
      %266 = sbr.rel (0) target = $region17
    $region16: #{tpu_custom_call.1} parent=1 // pred_region
      %s268 = ssub.s32 16, 16
      %269 = vsyncadd [#allocation4], %s268
      %s271 = sshll.u32 [#allocation3], 4
      %s272 = int_to_ptr.vmem [resolvable:$true] %s271
      %274 = dma.vmem_to_hbm [thread:$0]  %s272, 16, %s3, [#allocation4]
    $region17: #{tpu_custom_call.1} parent=1 // pred_fallthru
      _
    // Predicated region
    $region18: #{tpu_custom_call.1} parent=1 // pred_check
      _
    $region19: #{tpu_custom_call.1} parent=1 // pred_check_branch
      %276 = sbr.rel (0) target = $region21
    $region20: #{tpu_custom_call.1} parent=1 // pred_region
      %277 = dma.done [#allocation4], 16
    $region21: #{tpu_custom_call.1} parent=1 // pred_fallthru
      _
    %278 = vsyncpa [#allocation4], 1

</llo_original>
